<compile_context>
chip_gen: v5e
topology: v5e:2x2
jax: 0.10.0
libtpu: 0.0.40
codegen_flags: <defaults>
</compile_context>

<pallas_src>
import math
import functools

import jax
import jax.numpy as jnp
from jax import lax
from jax.experimental import pallas as pl
from jax.experimental.pallas import tpu as pltpu


def _pe_dropout_kernel(seed_ref, x_ref, pe_ref, o_ref, *,
                       batch: int, drop_threshold: int, scale: float,
                       use_hw_prng: bool):
    """One (tile_rows, B*D) block: o = dropout(x + repeat_lanes(pe, B))."""
    x = x_ref[...].astype(jnp.float32)           # (tile_rows, B*D)
    pe = pe_ref[...].astype(jnp.float32)         # (tile_rows, D)
    if batch > 1:
        # Lane-replicate pe B times so pe2[:, b*D + d] == pe[:, d].  XLU-side work
        # on a tiny block; keeps pe's HBM traffic at 1/B of x's.
        pe = jnp.concatenate([pe] * batch, axis=-1)
    y = x + pe

    if drop_threshold > 0:                       # static: compiled out when p == 0
        shape = x_ref.shape
        if use_hw_prng:
            # One hardware-PRNG seed per grid tile -> independent masks per tile,
            # ~1 compare + select + mul of vector work per element.
            pltpu.prng_seed(seed_ref[0] + pl.program_id(0))
            raw = pltpu.prng_random_bits(shape)
            bits = raw if raw.dtype == jnp.uint32 else pltpu.bitcast(raw, jnp.uint32)
        else:
            # Portable counter-hash fallback (interpret / non-TPU backends).
            rows, cols = shape
            flat = (lax.broadcasted_iota(jnp.uint32, shape, 0) * jnp.uint32(cols)
                    + lax.broadcasted_iota(jnp.uint32, shape, 1))
            key = (seed_ref[0].astype(jnp.uint32) * jnp.uint32(0x9E3779B9)
                   + jnp.uint32(0x85EBCA6B)
                   + (pl.program_id(0) * (rows * cols)).astype(jnp.uint32))
            bits = flat + key
            bits = (bits ^ (bits >> 16)) * jnp.uint32(0x7FEB352D)
            bits = (bits ^ (bits >> 15)) * jnp.uint32(0x846CA68B)
            bits = bits ^ (bits >> 16)
        keep = bits >= jnp.uint32(drop_threshold)          # P(keep) = 1 - p
        y = jnp.where(keep, y * jnp.float32(scale), jnp.float32(0.0))

    o_ref[...] = y.astype(o_ref.dtype)


@functools.lru_cache(maxsize=16)
def _sinusoidal_pe_cached(seq_len: int, d_model: int):
    """(seq_len, d_model) float32 buffer, identical to the PyTorch module's `pe`."""
    position = jnp.arange(seq_len, dtype=jnp.float32)[:, None]
    div_term = jnp.exp(jnp.arange(0, d_model, 2, dtype=jnp.float32)
                       * (-math.log(10000.0) / d_model))
    pe = jnp.zeros((seq_len, d_model), dtype=jnp.float32)
    pe = pe.at[:, 0::2].set(jnp.sin(position * div_term))
    pe = pe.at[:, 1::2].set(jnp.cos(position * div_term))
    return jax.device_put(pe)


def positional_encoding(x: jax.Array, *, dropout_p: float = 0.1, seed: int = 0,
                        tile_rows=None, use_hw_prng=None) -> jax.Array:
    """x: (seq_len, batch, d_model).  Returns dropout(x + pe[:seq_len]) (training mode).

    NOTE: vary `seed` every training step to get a fresh dropout mask (the mask is a
    pure function of (seed, tile)); this matches nn.Dropout statistically, not bit-wise.
    """
    S, B, D = x.shape
    if D % 2 != 0:
        raise ValueError("d_model must be even (same restriction as the PyTorch module)")
    if not (0.0 <= dropout_p < 1.0):
        raise ValueError("dropout_p must be in [0, 1)")
    if use_hw_prng is None:
        use_hw_prng = jax.default_backend() == "tpu"

    pe = _sinusoidal_pe_cached(S, D)          # (S, D) f32, computed once and cached
    BD = B * D
    x2 = x.reshape(S, BD)                     # lane-dense 2-D view (free: contiguous)
    itemsize = jnp.dtype(x.dtype).itemsize
    row_bytes = BD * itemsize

    # ~8 MiB x/out blocks: >=85% of HBM roofline on v6e, still fits v7x's 64 MiB
    # VMEM double-buffered; keep >= ~8 grid steps on large inputs for the 2-TC split.
    if tile_rows is None:
        target_bytes = 8 * 1024 * 1024
        tile_rows = max(8, target_bytes // max(1, row_bytes))
        if S >= 64:
            tile_rows = min(tile_rows, max(8, pl.cdiv(S, 8)))
    tile_rows = int(tile_rows)
    if tile_rows >= S:
        tile_rows = S                          # full-extent block satisfies (8,128) rule
    elif S >= 8:
        tile_rows = max(8, tile_rows - tile_rows % 8)
    grid = (pl.cdiv(S, tile_rows),)

    # Explicit VMEM budget: double-buffered x-in + out + pe, with headroom.
    block_x_bytes = tile_rows * BD * itemsize
    block_pe_bytes = tile_rows * D * 4
    need = 4 * block_x_bytes + 2 * block_pe_bytes
    vmem_limit = int(min(64 * 1024 * 1024,
                         max(32 * 1024 * 1024, need * 5 // 4 + (2 << 20))))

    drop_threshold = min(int(round(float(dropout_p) * float(1 << 32))), (1 << 32) - 1)
    scale = 1.0 / (1.0 - float(dropout_p)) if dropout_p > 0.0 else 1.0
    kernel = functools.partial(_pe_dropout_kernel, batch=B,
                               drop_threshold=drop_threshold, scale=scale,
                               use_hw_prng=bool(use_hw_prng))

    seed_arr = jnp.asarray([seed], dtype=jnp.int32)

    grid_spec = pltpu.PrefetchScalarGridSpec(
        num_scalar_prefetch=1,                 # seed lands in SMEM, off the vector path
        grid=grid,
        in_specs=[
            pl.BlockSpec((tile_rows, BD), lambda i, seed: (i, 0)),   # x tile
            pl.BlockSpec((tile_rows, D), lambda i, seed: (i, 0)),    # pe tile
        ],
        out_specs=pl.BlockSpec((tile_rows, BD), lambda i, seed: (i, 0)),
    )

    out2 = pl.pallas_call(
        kernel,
        out_shape=jax.ShapeDtypeStruct((S, BD), x.dtype),
        grid_spec=grid_spec,
        compiler_params=pltpu.CompilerParams(
            dimension_semantics=("parallel",),
            vmem_limit_bytes=vmem_limit),
    )(seed_arr, x2, pe)
    return out2.reshape(S, B, D)


if __name__ == "__main__":
    key = jax.random.PRNGKey(0)
    S, B, D = 8, 2, 32                        # seq_len, batch, d_model (small demo shapes)
    x = jax.random.normal(key, (S, B, D), dtype=jnp.float32)
    ref0 = x + _sinusoidal_pe_cached(S, D)[:, None, :]

    # 1) Deterministic path (p=0): must match x + pe.
    out0 = jax.block_until_ready(positional_encoding(x, dropout_p=0.0))
    assert out0.shape == (S, B, D)
    assert jnp.allclose(out0, ref0, atol=1e-5, rtol=1e-5), "PE add mismatch"

    # 2) Multi-tile grid (grid=(4,)) on the deterministic path.
    S2 = 32
    x2 = jax.random.normal(jax.random.PRNGKey(1), (S2, B, D), dtype=jnp.float32)
    out2 = jax.block_until_ready(positional_encoding(x2, dropout_p=0.0, tile_rows=8))
    ref2 = x2 + _sinusoidal_pe_cached(S2, D)[:, None, :]
    assert jnp.allclose(out2, ref2, atol=1e-5, rtol=1e-5), "tiled PE add mismatch"

    # 3) Training-mode dropout (p=0.1): kept elements must equal (x+pe)/(1-p).
    p = 0.1
    out = jax.block_until_ready(positional_encoding(x, dropout_p=p, seed=123))
    assert out.shape == (S, B, D)
    kept = out != 0.0
    expected = ref0 / (1.0 - p)
    assert jnp.allclose(jnp.where(kept, out, 0.0), jnp.where(kept, expected, 0.0),
                        atol=1e-4, rtol=1e-4), "dropout scaling mismatch"
    drop_rate = 1.0 - float(jnp.mean(kept.astype(jnp.float32)))
    assert 0.0 < drop_rate < 0.4, f"implausible dropout rate {drop_rate}"

    # 4) Per-tile dropout masks must differ (PRNG is re-seeded with the tile index).
    out3 = jax.block_until_ready(
        positional_encoding(x2, dropout_p=0.5, seed=7, tile_rows=8))
    masks = (out3 != 0.0).reshape(4, -1)
    assert not bool(jnp.all(masks[0] == masks[1])), "dropout masks identical across tiles"

    # TODO(synk): dropout matches nn.Dropout statistically (inverted scaling,
    # P(drop)=p) but is not bit-identical to torch's RNG stream.
    print("KERNEL_OK")
</pallas_src>

<mosaic_0001>
module attributes {stable_mosaic.version = 11 : i64} {
  func.func @_pe_dropout_kernel(%arg0: i32, %arg1: memref<1xi32, #tpu.memory_space<smem>>, %arg2: memref<8x64xf32, #tpu.memory_space<vmem>>, %arg3: memref<8x32xf32, #tpu.memory_space<vmem>>, %arg4: memref<8x64xf32, #tpu.memory_space<vmem>>) attributes {dimension_semantics = [#tpu.dimension_semantics<parallel>], iteration_bounds = array<i64: 1>, scalar_prefetch = 1 : i64, scratch_operands = 0 : i64, tpu.core_type = #tpu.core_type<tc>, window_params = [{transform_indices = @transform_0, window_bounds = array<i64: 8, 64>}, {transform_indices = @transform_1, window_bounds = array<i64: 8, 32>}, {transform_indices = @transform_2, window_bounds = array<i64: 8, 64>}]} {
    %c0 = arith.constant 0 : index
    %c0_0 = arith.constant 0 : index
    %0 = vector.load %arg2[%c0, %c0_0] : memref<8x64xf32, #tpu.memory_space<vmem>>, vector<8x64xf32>
    %c0_1 = arith.constant 0 : index
    %c0_2 = arith.constant 0 : index
    %1 = vector.load %arg3[%c0_1, %c0_2] : memref<8x32xf32, #tpu.memory_space<vmem>>, vector<8x32xf32>
    %2 = tpu.concatenate %1, %1 in 1 : vector<8x32xf32>, vector<8x32xf32> -> vector<8x64xf32>
    %3 = arith.addf %0, %2 : vector<8x64xf32>
    %c0_3 = arith.constant 0 : index
    %c0_4 = arith.constant 0 : index
    %4 = vector.load %arg4[%c0_3, %c0_4] : memref<8x64xf32, #tpu.memory_space<vmem>>, vector<8x64xf32>
    tpu.vector_store %arg4[%c0_3, %c0_4], %3 {strides = array<i32>} : memref<8x64xf32, #tpu.memory_space<vmem>>, vector<8x64xf32>,
    return
  }
  func.func @transform_0(%arg0: i32, %arg1: memref<1xi32, #tpu.memory_space<smem>>) -> (i32, i32) {
    %c0_i32 = arith.constant 0 : i32
    %c0_i32_0 = arith.constant 0 : i32
    return %arg0, %c0_i32 : i32, i32
  }
  func.func @transform_1(%arg0: i32, %arg1: memref<1xi32, #tpu.memory_space<smem>>) -> (i32, i32) {
    %c0_i32 = arith.constant 0 : i32
    %c0_i32_0 = arith.constant 0 : i32
    return %arg0, %c0_i32 : i32, i32
  }
  func.func @transform_2(%arg0: i32, %arg1: memref<1xi32, #tpu.memory_space<smem>>) -> (i32, i32) {
    %c0_i32 = arith.constant 0 : i32
    %c0_i32_0 = arith.constant 0 : i32
    return %arg0, %c0_i32 : i32, i32
  }
}

</mosaic_0001>

<llo_original>
// kernel: tpu_custom_call.1
$region0: #{tpu_custom_call.1}
  #allocation0 [shape = 'u32[]', space=smem, size = 0x4, offset = 0x4, fixed_abs, tag = 'smem constant byte address 0x4 - core index']
  #allocation1 [shape = 'u32[72,128]{1,0:T(1,128)}', space=vmem, size = 0x9000, scoped, tag = 'internal scratch']
  #allocation2 [shape = 's32[1]{0}', space=sflag, size = 0x4, scoped, tag = 'scoped memory for tpu_custom_call.1']
  #allocation3 [shape = 's32[1]{0:T(128)S(6)}', space=smem, size = 0x200, scoped, tag = 'prefetched SMEM operand 0']
  %s0 = inlined_call_operand.<no memory space> [shape: s32[1], index: 0, kind: input, shape index: {}]
  %s1 = inlined_call_operand.hbm [shape: f32[8,64], index: 1, kind: input, shape index: {}]
  %s2 = inlined_call_operand.hbm [shape: f32[8,32], index: 2, kind: input, shape index: {}]
  %s3 = inlined_call_operand.hbm [shape: f32[8,64], index: 3, kind: output, shape index: {}]
  %s4 = sld [smem:[#allocation0]]
  $region26: #{tpu_custom_call.1} parent=0
    _
  %s6 = ssub.s32 1, %s4
  %s7 = scalar_select 0, %s6, %s4
  %8 = sst [smem:[#allocation3]] %s0
  $region1: #{tpu_custom_call.1} parent=0
    #allocation4 [shape = 'u8[4096]{0}', space=vmem, size = 0x1000, scoped, tag = 'input window, operand 1, single buffered']
    #allocation5 [shape = 's32[1]{0}', space=sflag, size = 0x4, scoped, tag = 'scoped memory for tpu_custom_call.1']
    #allocation6 [shape = 's32[1]{0}', space=sflag, size = 0x4, scoped, tag = 'scoped memory for tpu_custom_call.1']
    #allocation7 [shape = 'u8[4096]{0}', space=vmem, size = 0x1000, scoped, tag = 'input window, operand 2, single buffered']
    #allocation8 [shape = 's32[1]{0}', space=sflag, size = 0x4, scoped, tag = 'scoped memory for tpu_custom_call.1']
    #allocation9 [shape = 'u8[4096]{0}', space=vmem, size = 0x1000, scoped, tag = 'output window, operand 0, single buffered']
    %9 = vsyncpa [#allocation5], 0
    %10 = vsyncpa [#allocation8], 0
    %11 = vsyncpa [#allocation6], 0
    // Predicated region
    $region2: #{tpu_custom_call.1} parent=1 // pred_check
      _
    $region3: #{tpu_custom_call.1} parent=1 // pred_check_branch
      %13 = sbr.rel (0) target = $region5
    $region4: #{tpu_custom_call.1} parent=1 // pred_region
      %15 = vsyncadd [#allocation5], 0
      %s17 = sshll.u32 %s1, 4
      %s18 = int_to_ptr.hbm [resolvable:$true] %s17
      %s19 = sshll.u32 [#allocation4], 4
      %s20 = int_to_ptr.vmem [resolvable:$true] %s19
      %22 = dma.hbm_to_vmem [thread:$0]  %s18, 128, %s20, [#allocation5]
    $region5: #{tpu_custom_call.1} parent=1 // pred_fallthru
      _
    // Predicated region
    $region6: #{tpu_custom_call.1} parent=1 // pred_check
      _
    $region7: #{tpu_custom_call.1} parent=1 // pred_check_branch
      %24 = sbr.rel (0) target = $region9
    $region8: #{tpu_custom_call.1} parent=1 // pred_region
      %26 = vsyncadd [#allocation8], 0
      %s28 = sshll.u32 %s2, 4
      %s29 = int_to_ptr.hbm [resolvable:$true] %s28
      %s30 = sshll.u32 [#allocation7], 4
      %s31 = int_to_ptr.vmem [resolvable:$true] %s30
      %33 = dma.hbm_to_vmem [thread:$0]  %s29, 128, %s31, [#allocation8]
    $region9: #{tpu_custom_call.1} parent=1 // pred_fallthru
      _
    // Predicated region
    $region10: #{tpu_custom_call.1} parent=1 // pred_check
      _
    $region11: #{tpu_custom_call.1} parent=1 // pred_check_branch
      %35 = sbr.rel (0) target = $region13
    $region12: #{tpu_custom_call.1} parent=1 // pred_region
      %37 = dma.done [#allocation5], 128
    $region13: #{tpu_custom_call.1} parent=1 // pred_fallthru
      _
    // Predicated region
    $region14: #{tpu_custom_call.1} parent=1 // pred_check
      _
    $region15: #{tpu_custom_call.1} parent=1 // pred_check_branch
      %39 = sbr.rel (0) target = $region17
    $region16: #{tpu_custom_call.1} parent=1 // pred_region
      %41 = dma.done [#allocation8], 128
    $region17: #{tpu_custom_call.1} parent=1 // pred_fallthru
      _
    %v42 = vld [vmem:[#allocation4] sm:$0xff]
    %v43 = vld [vmem:[#allocation7] sm:$0xff]
    %45 = vrot.lane.b32.xlu0 %v43, 32
    %v46 = vpop.permute.xlu0 %45
    %vm48 = vcmask 261120
    %v49 = vsel %vm48, %v43, %v46
    %v50 = vadd.f32 %v42, %v49
    %vm51 = vcmask 523264
    %52 = vst.msk [vmem:[#allocation9] sm:$0xff] %vm51, %v50
    // Predicated region
    $region18: #{tpu_custom_call.1} parent=1 // pred_check
      _
    $region19: #{tpu_custom_call.1} parent=1 // pred_check_branch
      %54 = sbr.rel (0) target = $region21
    $region20: #{tpu_custom_call.1} parent=1 // pred_region
      %56 = vsyncadd [#allocation6], 0
      %s58 = sshll.u32 [#allocation9], 4
      %s59 = int_to_ptr.vmem [resolvable:$true] %s58
      %s60 = sshll.u32 %s3, 4
      %s61 = int_to_ptr.hbm [resolvable:$true] %s60
      %63 = dma.vmem_to_hbm [thread:$0]  %s59, 128, %s61, [#allocation6]
    $region21: #{tpu_custom_call.1} parent=1 // pred_fallthru
      _
    // Predicated region
    $region22: #{tpu_custom_call.1} parent=1 // pred_check
      _
    $region23: #{tpu_custom_call.1} parent=1 // pred_check_branch
      %65 = sbr.rel (0) target = $region25
    $region24: #{tpu_custom_call.1} parent=1 // pred_region
      %67 = dma.done [#allocation6], 128
    $region25: #{tpu_custom_call.1} parent=1 // pred_fallthru
      _
    %68 = vsyncpa [#allocation5], 1
    %69 = vsyncpa [#allocation8], 1
    %70 = vsyncpa [#allocation6], 1

</llo_original>
